<compile_context>
chip_gen: v6e
topology: v6e:2x2x1
jax: 0.10.0
libtpu: 0.0.40
codegen_flags: <defaults>
</compile_context>

<pallas_src>
import jax
import jax.numpy as jnp
from jax import lax
from jax.experimental import pallas as pl
from jax.experimental.pallas import tpu as pltpu

NUM_PREFIX_TOKENS = 5
NUM_SUFFIX_TOKENS = 5

# DMA descriptor issue rate is ~1 per bundle (vector-misc slot); unrolling the
# issue/drain loops beyond ~8 buys no additional overlap, only code bloat.
_GATHER_UNROLL = 8


def _prompt_embed_kernel(ids_ref, word_hbm, prefix_hbm, suffix_hbm,
                         out_hbm, sem):
    """Assemble [prefix | word-gather | suffix] rows for one batch element.

    ids_ref    : (B*S,) int32 SMEM  -- scalar-prefetched, clamped token ids
    word_hbm   : (V, H)       HBM   -- word embedding table (never copied whole)
    prefix_hbm : (P, H)       HBM   -- prefix prompt embeddings
    suffix_hbm : (Q, H)       HBM   -- suffix prompt embeddings
    out_hbm    : (B, T, H)    HBM   -- final inputs_embeds (written via DMA only)
    sem        : DMA semaphores, shape (3,)  [0]=prefix [1]=suffix [2]=word rows
    """
    b = pl.program_id(0)
    P, _ = prefix_hbm.shape
    Q = suffix_hbm.shape[0]
    T = out_hbm.shape[1]
    S = T - P - Q

    # ---- constant prompt rows: one contiguous block DMA each -------------
    prefix_cp = pltpu.make_async_copy(
        prefix_hbm, out_hbm.at[b, pl.ds(0, P), :], sem.at[0])
    suffix_cp = pltpu.make_async_copy(
        suffix_hbm, out_hbm.at[b, pl.ds(P + S, Q), :], sem.at[1])
    prefix_cp.start()
    suffix_cp.start()

    def word_row_copy(tok, t):
        # One (1, H) row: word table row `tok` -> output row `t` of batch `b`,
        # HBM -> HBM directly (no VMEM staging, no writeback tail).
        return pltpu.make_async_copy(word_hbm.at[pl.ds(tok, 1), :],
                                     out_hbm.at[b, pl.ds(t, 1), :],
                                     sem.at[2])

    unroll = max(1, min(_GATHER_UNROLL, S))

    # ---- issue all S word-row gathers up-front so they overlap -----------
    def issue(i, carry):
        tok = ids_ref[b * S + i]          # cheap SMEM scalar read
        word_row_copy(tok, P + i).start()
        return carry

    lax.fori_loop(0, S, issue, None, unroll=unroll)

    # ---- drain: every word-row copy signals the SAME semaphore and has the
    # SAME byte count (one H-wide row of the output dtype), so S waits with
    # any one-row descriptor drain them all; order is irrelevant. -----------
    def drain(i, carry):
        word_row_copy(0, P).wait()
        return carry

    lax.fori_loop(0, S, drain, None, unroll=unroll)

    prefix_cp.wait()
    suffix_cp.wait()


def bidirectional_prompt_forward(input_ids, attention_mask, token_type_ids,
                                 word_embedding_table,
                                 prefix_embeddings, suffix_embeddings):
    """Mirrors BidirectionalPromptModel.forward up to the BERT call.

    input_ids      : [B, 1, S] int32   (torch passes [B,1,S] then squeeze(1))
    attention_mask : [B, 1, S] float32 or None
    token_type_ids : [B, 1, S] int32   or None
    word_embedding_table : [V, H]
    prefix_embeddings    : [P, H]
    suffix_embeddings    : [Q, H]

    Returns (inputs_embeds [B,T,H], attention_mask [B,T], token_type_ids [B,T])
    with T = P + S + Q.
    """
    B, _, S = input_ids.shape
    V, H = word_embedding_table.shape
    P = prefix_embeddings.shape[0]
    Q = suffix_embeddings.shape[0]
    T = P + S + Q

    # squeeze(1) + clamp (DMA gather has no runtime bounds check), and flatten
    # to 1-D so the SMEM prefetch array avoids 2-D sublane/lane padding.
    ids = jnp.clip(input_ids[:, 0, :].astype(jnp.int32), 0, V - 1).reshape(B * S)

    grid_spec = pltpu.PrefetchScalarGridSpec(
        num_scalar_prefetch=1,                   # ids -> SMEM
        grid=(B,),
        in_specs=[
            pl.BlockSpec(memory_space=pl.ANY),   # word table stays in HBM
            pl.BlockSpec(memory_space=pl.ANY),   # prefix rows stay in HBM
            pl.BlockSpec(memory_space=pl.ANY),   # suffix rows stay in HBM
        ],
        out_specs=pl.BlockSpec(memory_space=pl.ANY),  # gather straight into HBM
        scratch_shapes=[pltpu.SemaphoreType.DMA((3,))],
    )

    inputs_embeds = pl.pallas_call(
        _prompt_embed_kernel,
        grid_spec=grid_spec,
        out_shape=jax.ShapeDtypeStruct((B, T, H), word_embedding_table.dtype),
        compiler_params=pltpu.CompilerParams(
            dimension_semantics=("parallel",)),  # batch rows independent (2 TCs on v7x)
    )(ids, word_embedding_table, prefix_embeddings, suffix_embeddings)

    # Mask / token-type extension is trivially cheap: keep it in plain JAX
    # instead of adding two narrow (non-lane-dense) output streams.
    ext_mask = None
    if attention_mask is not None:
        attn = attention_mask[:, 0, :]
        ext_mask = jnp.concatenate(
            [jnp.ones((B, P), attn.dtype), attn, jnp.ones((B, Q), attn.dtype)],
            axis=1)

    ext_types = None
    if token_type_ids is not None:
        types = token_type_ids[:, 0, :].astype(jnp.int32)
        ext_types = jnp.concatenate(
            [jnp.zeros((B, P), jnp.int32), types, jnp.zeros((B, Q), jnp.int32)],
            axis=1)

    return inputs_embeds, ext_mask, ext_types


if __name__ == "__main__":
    # Small, deterministic synthetic setup consistent with the module.
    B, S, H = 2, 8, 128
    VOCAB = 118
    P, Q = NUM_PREFIX_TOKENS, NUM_SUFFIX_TOKENS

    key = jax.random.PRNGKey(0)
    k_tab, k_pre, k_suf, k_ids, k_mask, k_type = jax.random.split(key, 6)

    word_table = jax.random.normal(k_tab, (VOCAB, H), dtype=jnp.float32) * 0.02
    prefix_emb = jax.random.normal(k_pre, (P, H), dtype=jnp.float32) * 0.02
    suffix_emb = jax.random.normal(k_suf, (Q, H), dtype=jnp.float32) * 0.02

    input_ids = jax.random.randint(k_ids, (B, 1, S), 0, VOCAB, dtype=jnp.int32)
    attention_mask = jax.random.bernoulli(k_mask, 0.9, (B, 1, S)).astype(jnp.float32)
    token_type_ids = jax.random.randint(k_type, (B, 1, S), 0, 2, dtype=jnp.int32)

    embeds, mask, types = bidirectional_prompt_forward(
        input_ids, attention_mask, token_type_ids,
        word_table, prefix_emb, suffix_emb)
    jax.block_until_ready((embeds, mask, types))

    # Pure-JAX reference of the same semantics for a correctness check.
    ids_sq = input_ids[:, 0, :]
    ref_embeds = jnp.concatenate(
        [jnp.broadcast_to(prefix_emb[None], (B, P, H)),
         word_table[ids_sq],
         jnp.broadcast_to(suffix_emb[None], (B, Q, H))], axis=1)
    ref_mask = jnp.concatenate(
        [jnp.ones((B, P), jnp.float32), attention_mask[:, 0, :],
         jnp.ones((B, Q), jnp.float32)], axis=1)
    ref_types = jnp.concatenate(
        [jnp.zeros((B, P), jnp.int32), token_type_ids[:, 0, :],
         jnp.zeros((B, Q), jnp.int32)], axis=1)

    assert embeds.shape == (B, P + S + Q, H)
    assert jnp.allclose(embeds, ref_embeds, atol=1e-6)
    assert jnp.array_equal(mask, ref_mask)
    assert jnp.array_equal(types, ref_types)

    print("KERNEL_OK")
</pallas_src>

<mosaic_0001>
module attributes {stable_mosaic.version = 11 : i64} {
  func.func @_prompt_embed_kernel(%arg0: i32, %arg1: memref<16xi32, #tpu.memory_space<smem>>, %arg2: memref<118x128xf32, #tpu.memory_space<any>>, %arg3: memref<5x128xf32, #tpu.memory_space<any>>, %arg4: memref<5x128xf32, #tpu.memory_space<any>>, %arg5: memref<2x18x128xf32, #tpu.memory_space<any>>, %arg6: memref<3x!tpu.dma_semaphore, #tpu.memory_space<semaphore_mem>>) attributes {dimension_semantics = [#tpu.dimension_semantics<parallel>], iteration_bounds = array<i64: 2>, scalar_prefetch = 1 : i64, scratch_operands = 1 : i64, tpu.core_type = #tpu.core_type<tc>, window_params = [{}, {}, {}, {}]} {
    %c0_i32 = arith.constant 0 : i32
    %c0_i32_0 = arith.constant 0 : i32
    %c0_i32_1 = arith.constant 0 : i32
    %0 = tpu.memref_slice %arg5[%arg0, %c0_i32_0, %c0_i32_1] : memref<2x18x128xf32, #tpu.memory_space<any>> -> memref<1x5x128xf32, #tpu.memory_space<any>>
    %1 = tpu.memref_squeeze %0 : memref<1x5x128xf32, #tpu.memory_space<any>> -> memref<5x128xf32, #tpu.memory_space<any>>
    %2 = tpu.memref_slice %arg6[%c0_i32] : memref<3x!tpu.dma_semaphore, #tpu.memory_space<semaphore_mem>> -> memref<1x!tpu.dma_semaphore, #tpu.memory_space<semaphore_mem>>
    %3 = tpu.memref_squeeze %2 : memref<1x!tpu.dma_semaphore, #tpu.memory_space<semaphore_mem>> -> memref<!tpu.dma_semaphore, #tpu.memory_space<semaphore_mem>>
    tpu.enqueue_dma source(%arg3 : memref<5x128xf32, #tpu.memory_space<any>>) target(%1 : memref<5x128xf32, #tpu.memory_space<any>>) target_semaphore(%3 : memref<!tpu.dma_semaphore, #tpu.memory_space<semaphore_mem>>)
    %c1_i32 = arith.constant 1 : i32
    %c13_i32 = arith.constant 13 : i32
    %c0_i32_2 = arith.constant 0 : i32
    %4 = tpu.memref_slice %arg5[%arg0, %c13_i32, %c0_i32_2] : memref<2x18x128xf32, #tpu.memory_space<any>> -> memref<1x5x128xf32, #tpu.memory_space<any>>
    %5 = tpu.memref_squeeze %4 : memref<1x5x128xf32, #tpu.memory_space<any>> -> memref<5x128xf32, #tpu.memory_space<any>>
    %6 = tpu.memref_slice %arg6[%c1_i32] : memref<3x!tpu.dma_semaphore, #tpu.memory_space<semaphore_mem>> -> memref<1x!tpu.dma_semaphore, #tpu.memory_space<semaphore_mem>>
    %7 = tpu.memref_squeeze %6 : memref<1x!tpu.dma_semaphore, #tpu.memory_space<semaphore_mem>> -> memref<!tpu.dma_semaphore, #tpu.memory_space<semaphore_mem>>
    tpu.enqueue_dma source(%arg4 : memref<5x128xf32, #tpu.memory_space<any>>) target(%5 : memref<5x128xf32, #tpu.memory_space<any>>) target_semaphore(%7 : memref<!tpu.dma_semaphore, #tpu.memory_space<semaphore_mem>>)
    %c0_i32_3 = arith.constant 0 : i32
    %c8_i32 = arith.constant 8 : i32
    %8 = arith.muli %arg0, %c8_i32 : i32
    %9 = arith.addi %8, %c0_i32_3 : i32
    %10 = arith.index_cast %9 : i32 to index
    %11 = memref.load %arg1[%10] : memref<16xi32, #tpu.memory_space<smem>>
    %c5_i32 = arith.constant 5 : i32
    %12 = arith.addi %c5_i32, %c0_i32_3 : i32
    %c2_i32 = arith.constant 2 : i32
    %c0_i32_4 = arith.constant 0 : i32
    %13 = tpu.memref_slice %arg2[%11, %c0_i32_4] : memref<118x128xf32, #tpu.memory_space<any>> -> memref<1x128xf32, #tpu.memory_space<any>>
    %c0_i32_5 = arith.constant 0 : i32
    %14 = tpu.memref_slice %arg5[%arg0, %12, %c0_i32_5] : memref<2x18x128xf32, #tpu.memory_space<any>> -> memref<1x1x128xf32, #tpu.memory_space<any>>
    %15 = tpu.memref_squeeze %14 : memref<1x1x128xf32, #tpu.memory_space<any>> -> memref<1x128xf32, #tpu.memory_space<any>>
    %16 = tpu.memref_slice %arg6[%c2_i32] : memref<3x!tpu.dma_semaphore, #tpu.memory_space<semaphore_mem>> -> memref<1x!tpu.dma_semaphore, #tpu.memory_space<semaphore_mem>>
    %17 = tpu.memref_squeeze %16 : memref<1x!tpu.dma_semaphore, #tpu.memory_space<semaphore_mem>> -> memref<!tpu.dma_semaphore, #tpu.memory_space<semaphore_mem>>
    tpu.enqueue_dma source(%13 : memref<1x128xf32, #tpu.memory_space<any>>) target(%15 : memref<1x128xf32, #tpu.memory_space<any>>) target_semaphore(%17 : memref<!tpu.dma_semaphore, #tpu.memory_space<semaphore_mem>>)
    %c1_i32_6 = arith.constant 1 : i32
    %c8_i32_7 = arith.constant 8 : i32
    %18 = arith.muli %arg0, %c8_i32_7 : i32
    %19 = arith.addi %18, %c1_i32_6 : i32
    %20 = arith.index_cast %19 : i32 to index
    %21 = memref.load %arg1[%20] : memref<16xi32, #tpu.memory_space<smem>>
    %c5_i32_8 = arith.constant 5 : i32
    %22 = arith.addi %c5_i32_8, %c1_i32_6 : i32
    %c2_i32_9 = arith.constant 2 : i32
    %c0_i32_10 = arith.constant 0 : i32
    %23 = tpu.memref_slice %arg2[%21, %c0_i32_10] : memref<118x128xf32, #tpu.memory_space<any>> -> memref<1x128xf32, #tpu.memory_space<any>>
    %c0_i32_11 = arith.constant 0 : i32
    %24 = tpu.memref_slice %arg5[%arg0, %22, %c0_i32_11] : memref<2x18x128xf32, #tpu.memory_space<any>> -> memref<1x1x128xf32, #tpu.memory_space<any>>
    %25 = tpu.memref_squeeze %24 : memref<1x1x128xf32, #tpu.memory_space<any>> -> memref<1x128xf32, #tpu.memory_space<any>>
    %26 = tpu.memref_slice %arg6[%c2_i32_9] : memref<3x!tpu.dma_semaphore, #tpu.memory_space<semaphore_mem>> -> memref<1x!tpu.dma_semaphore, #tpu.memory_space<semaphore_mem>>
    %27 = tpu.memref_squeeze %26 : memref<1x!tpu.dma_semaphore, #tpu.memory_space<semaphore_mem>> -> memref<!tpu.dma_semaphore, #tpu.memory_space<semaphore_mem>>
    tpu.enqueue_dma source(%23 : memref<1x128xf32, #tpu.memory_space<any>>) target(%25 : memref<1x128xf32, #tpu.memory_space<any>>) target_semaphore(%27 : memref<!tpu.dma_semaphore, #tpu.memory_space<semaphore_mem>>)
    %c2_i32_12 = arith.constant 2 : i32
    %c8_i32_13 = arith.constant 8 : i32
    %28 = arith.muli %arg0, %c8_i32_13 : i32
    %29 = arith.addi %28, %c2_i32_12 : i32
    %30 = arith.index_cast %29 : i32 to index
    %31 = memref.load %arg1[%30] : memref<16xi32, #tpu.memory_space<smem>>
    %c5_i32_14 = arith.constant 5 : i32
    %32 = arith.addi %c5_i32_14, %c2_i32_12 : i32
    %c2_i32_15 = arith.constant 2 : i32
    %c0_i32_16 = arith.constant 0 : i32
    %33 = tpu.memref_slice %arg2[%31, %c0_i32_16] : memref<118x128xf32, #tpu.memory_space<any>> -> memref<1x128xf32, #tpu.memory_space<any>>
    %c0_i32_17 = arith.constant 0 : i32
    %34 = tpu.memref_slice %arg5[%arg0, %32, %c0_i32_17] : memref<2x18x128xf32, #tpu.memory_space<any>> -> memref<1x1x128xf32, #tpu.memory_space<any>>
    %35 = tpu.memref_squeeze %34 : memref<1x1x128xf32, #tpu.memory_space<any>> -> memref<1x128xf32, #tpu.memory_space<any>>
    %36 = tpu.memref_slice %arg6[%c2_i32_15] : memref<3x!tpu.dma_semaphore, #tpu.memory_space<semaphore_mem>> -> memref<1x!tpu.dma_semaphore, #tpu.memory_space<semaphore_mem>>
    %37 = tpu.memref_squeeze %36 : memref<1x!tpu.dma_semaphore, #tpu.memory_space<semaphore_mem>> -> memref<!tpu.dma_semaphore, #tpu.memory_space<semaphore_mem>>
    tpu.enqueue_dma source(%33 : memref<1x128xf32, #tpu.memory_space<any>>) target(%35 : memref<1x128xf32, #tpu.memory_space<any>>) target_semaphore(%37 : memref<!tpu.dma_semaphore, #tpu.memory_space<semaphore_mem>>)
    %c3_i32 = arith.constant 3 : i32
    %c8_i32_18 = arith.constant 8 : i32
    %38 = arith.muli %arg0, %c8_i32_18 : i32
    %39 = arith.addi %38, %c3_i32 : i32
    %40 = arith.index_cast %39 : i32 to index
    %41 = memref.load %arg1[%40] : memref<16xi32, #tpu.memory_space<smem>>
    %c5_i32_19 = arith.constant 5 : i32
    %42 = arith.addi %c5_i32_19, %c3_i32 : i32
    %c2_i32_20 = arith.constant 2 : i32
    %c0_i32_21 = arith.constant 0 : i32
    %43 = tpu.memref_slice %arg2[%41, %c0_i32_21] : memref<118x128xf32, #tpu.memory_space<any>> -> memref<1x128xf32, #tpu.memory_space<any>>
    %c0_i32_22 = arith.constant 0 : i32
    %44 = tpu.memref_slice %arg5[%arg0, %42, %c0_i32_22] : memref<2x18x128xf32, #tpu.memory_space<any>> -> memref<1x1x128xf32, #tpu.memory_space<any>>
    %45 = tpu.memref_squeeze %44 : memref<1x1x128xf32, #tpu.memory_space<any>> -> memref<1x128xf32, #tpu.memory_space<any>>
    %46 = tpu.memref_slice %arg6[%c2_i32_20] : memref<3x!tpu.dma_semaphore, #tpu.memory_space<semaphore_mem>> -> memref<1x!tpu.dma_semaphore, #tpu.memory_space<semaphore_mem>>
    %47 = tpu.memref_squeeze %46 : memref<1x!tpu.dma_semaphore, #tpu.memory_space<semaphore_mem>> -> memref<!tpu.dma_semaphore, #tpu.memory_space<semaphore_mem>>
    tpu.enqueue_dma source(%43 : memref<1x128xf32, #tpu.memory_space<any>>) target(%45 : memref<1x128xf32, #tpu.memory_space<any>>) target_semaphore(%47 : memref<!tpu.dma_semaphore, #tpu.memory_space<semaphore_mem>>)
    %c4_i32 = arith.constant 4 : i32
    %c8_i32_23 = arith.constant 8 : i32
    %48 = arith.muli %arg0, %c8_i32_23 : i32
    %49 = arith.addi %48, %c4_i32 : i32
    %50 = arith.index_cast %49 : i32 to index
    %51 = memref.load %arg1[%50] : memref<16xi32, #tpu.memory_space<smem>>
    %c5_i32_24 = arith.constant 5 : i32
    %52 = arith.addi %c5_i32_24, %c4_i32 : i32
    %c2_i32_25 = arith.constant 2 : i32
    %c0_i32_26 = arith.constant 0 : i32
    %53 = tpu.memref_slice %arg2[%51, %c0_i32_26] : memref<118x128xf32, #tpu.memory_space<any>> -> memref<1x128xf32, #tpu.memory_space<any>>
    %c0_i32_27 = arith.constant 0 : i32
    %54 = tpu.memref_slice %arg5[%arg0, %52, %c0_i32_27] : memref<2x18x128xf32, #tpu.memory_space<any>> -> memref<1x1x128xf32, #tpu.memory_space<any>>
    %55 = tpu.memref_squeeze %54 : memref<1x1x128xf32, #tpu.memory_space<any>> -> memref<1x128xf32, #tpu.memory_space<any>>
    %56 = tpu.memref_slice %arg6[%c2_i32_25] : memref<3x!tpu.dma_semaphore, #tpu.memory_space<semaphore_mem>> -> memref<1x!tpu.dma_semaphore, #tpu.memory_space<semaphore_mem>>
    %57 = tpu.memref_squeeze %56 : memref<1x!tpu.dma_semaphore, #tpu.memory_space<semaphore_mem>> -> memref<!tpu.dma_semaphore, #tpu.memory_space<semaphore_mem>>
    tpu.enqueue_dma source(%53 : memref<1x128xf32, #tpu.memory_space<any>>) target(%55 : memref<1x128xf32, #tpu.memory_space<any>>) target_semaphore(%57 : memref<!tpu.dma_semaphore, #tpu.memory_space<semaphore_mem>>)
    %c5_i32_28 = arith.constant 5 : i32
    %c8_i32_29 = arith.constant 8 : i32
    %58 = arith.muli %arg0, %c8_i32_29 : i32
    %59 = arith.addi %58, %c5_i32_28 : i32
    %60 = arith.index_cast %59 : i32 to index
    %61 = memref.load %arg1[%60] : memref<16xi32, #tpu.memory_space<smem>>
    %c5_i32_30 = arith.constant 5 : i32
    %62 = arith.addi %c5_i32_30, %c5_i32_28 : i32
    %c2_i32_31 = arith.constant 2 : i32
    %c0_i32_32 = arith.constant 0 : i32
    %63 = tpu.memref_slice %arg2[%61, %c0_i32_32] : memref<118x128xf32, #tpu.memory_space<any>> -> memref<1x128xf32, #tpu.memory_space<any>>
    %c0_i32_33 = arith.constant 0 : i32
    %64 = tpu.memref_slice %arg5[%arg0, %62, %c0_i32_33] : memref<2x18x128xf32, #tpu.memory_space<any>> -> memref<1x1x128xf32, #tpu.memory_space<any>>
    %65 = tpu.memref_squeeze %64 : memref<1x1x128xf32, #tpu.memory_space<any>> -> memref<1x128xf32, #tpu.memory_space<any>>
    %66 = tpu.memref_slice %arg6[%c2_i32_31] : memref<3x!tpu.dma_semaphore, #tpu.memory_space<semaphore_mem>> -> memref<1x!tpu.dma_semaphore, #tpu.memory_space<semaphore_mem>>
    %67 = tpu.memref_squeeze %66 : memref<1x!tpu.dma_semaphore, #tpu.memory_space<semaphore_mem>> -> memref<!tpu.dma_semaphore, #tpu.memory_space<semaphore_mem>>
    tpu.enqueue_dma source(%63 : memref<1x128xf32, #tpu.memory_space<any>>) target(%65 : memref<1x128xf32, #tpu.memory_space<any>>) target_semaphore(%67 : memref<!tpu.dma_semaphore, #tpu.memory_space<semaphore_mem>>)
    %c6_i32 = arith.constant 6 : i32
    %c8_i32_34 = arith.constant 8 : i32
    %68 = arith.muli %arg0, %c8_i32_34 : i32
    %69 = arith.addi %68, %c6_i32 : i32
    %70 = arith.index_cast %69 : i32 to index
    %71 = memref.load %arg1[%70] : memref<16xi32, #tpu.memory_space<smem>>
    %c5_i32_35 = arith.constant 5 : i32
    %72 = arith.addi %c5_i32_35, %c6_i32 : i32
    %c2_i32_36 = arith.constant 2 : i32
    %c0_i32_37 = arith.constant 0 : i32
    %73 = tpu.memref_slice %arg2[%71, %c0_i32_37] : memref<118x128xf32, #tpu.memory_space<any>> -> memref<1x128xf32, #tpu.memory_space<any>>
    %c0_i32_38 = arith.constant 0 : i32
    %74 = tpu.memref_slice %arg5[%arg0, %72, %c0_i32_38] : memref<2x18x128xf32, #tpu.memory_space<any>> -> memref<1x1x128xf32, #tpu.memory_space<any>>
    %75 = tpu.memref_squeeze %74 : memref<1x1x128xf32, #tpu.memory_space<any>> -> memref<1x128xf32, #tpu.memory_space<any>>
    %76 = tpu.memref_slice %arg6[%c2_i32_36] : memref<3x!tpu.dma_semaphore, #tpu.memory_space<semaphore_mem>> -> memref<1x!tpu.dma_semaphore, #tpu.memory_space<semaphore_mem>>
    %77 = tpu.memref_squeeze %76 : memref<1x!tpu.dma_semaphore, #tpu.memory_space<semaphore_mem>> -> memref<!tpu.dma_semaphore, #tpu.memory_space<semaphore_mem>>
    tpu.enqueue_dma source(%73 : memref<1x128xf32, #tpu.memory_space<any>>) target(%75 : memref<1x128xf32, #tpu.memory_space<any>>) target_semaphore(%77 : memref<!tpu.dma_semaphore, #tpu.memory_space<semaphore_mem>>)
    %c7_i32 = arith.constant 7 : i32
    %c8_i32_39 = arith.constant 8 : i32
    %78 = arith.muli %arg0, %c8_i32_39 : i32
    %79 = arith.addi %78, %c7_i32 : i32
    %80 = arith.index_cast %79 : i32 to index
    %81 = memref.load %arg1[%80] : memref<16xi32, #tpu.memory_space<smem>>
    %c5_i32_40 = arith.constant 5 : i32
    %82 = arith.addi %c5_i32_40, %c7_i32 : i32
    %c2_i32_41 = arith.constant 2 : i32
    %c0_i32_42 = arith.constant 0 : i32
    %83 = tpu.memref_slice %arg2[%81, %c0_i32_42] : memref<118x128xf32, #tpu.memory_space<any>> -> memref<1x128xf32, #tpu.memory_space<any>>
    %c0_i32_43 = arith.constant 0 : i32
    %84 = tpu.memref_slice %arg5[%arg0, %82, %c0_i32_43] : memref<2x18x128xf32, #tpu.memory_space<any>> -> memref<1x1x128xf32, #tpu.memory_space<any>>
    %85 = tpu.memref_squeeze %84 : memref<1x1x128xf32, #tpu.memory_space<any>> -> memref<1x128xf32, #tpu.memory_space<any>>
    %86 = tpu.memref_slice %arg6[%c2_i32_41] : memref<3x!tpu.dma_semaphore, #tpu.memory_space<semaphore_mem>> -> memref<1x!tpu.dma_semaphore, #tpu.memory_space<semaphore_mem>>
    %87 = tpu.memref_squeeze %86 : memref<1x!tpu.dma_semaphore, #tpu.memory_space<semaphore_mem>> -> memref<!tpu.dma_semaphore, #tpu.memory_space<semaphore_mem>>
    tpu.enqueue_dma source(%83 : memref<1x128xf32, #tpu.memory_space<any>>) target(%85 : memref<1x128xf32, #tpu.memory_space<any>>) target_semaphore(%87 : memref<!tpu.dma_semaphore, #tpu.memory_space<semaphore_mem>>)
    %c8_i32_44 = arith.constant 8 : i32
    %c0_i32_45 = arith.constant 0 : i32
    %c2_i32_46 = arith.constant 2 : i32
    %c0_i32_47 = arith.constant 0 : i32
    %c0_i32_48 = arith.constant 0 : i32
    %88 = tpu.memref_slice %arg2[%c0_i32_47, %c0_i32_48] : memref<118x128xf32, #tpu.memory_space<any>> -> memref<1x128xf32, #tpu.memory_space<any>>
    %c5_i32_49 = arith.constant 5 : i32
    %c0_i32_50 = arith.constant 0 : i32
    %89 = tpu.memref_slice %arg5[%arg0, %c5_i32_49, %c0_i32_50] : memref<2x18x128xf32, #tpu.memory_space<any>> -> memref<1x1x128xf32, #tpu.memory_space<any>>
    %90 = tpu.memref_squeeze %89 : memref<1x1x128xf32, #tpu.memory_space<any>> -> memref<1x128xf32, #tpu.memory_space<any>>
    %91 = tpu.memref_slice %arg6[%c2_i32_46] : memref<3x!tpu.dma_semaphore, #tpu.memory_space<semaphore_mem>> -> memref<1x!tpu.dma_semaphore, #tpu.memory_space<semaphore_mem>>
    %92 = tpu.memref_squeeze %91 : memref<1x!tpu.dma_semaphore, #tpu.memory_space<semaphore_mem>> -> memref<!tpu.dma_semaphore, #tpu.memory_space<semaphore_mem>>
    tpu.wait_dma2 semaphore(%92 : memref<!tpu.dma_semaphore, #tpu.memory_space<semaphore_mem>>) src(%88 : memref<1x128xf32, #tpu.memory_space<any>>) dst(%90 : memref<1x128xf32, #tpu.memory_space<any>>)
    %c1_i32_51 = arith.constant 1 : i32
    %c2_i32_52 = arith.constant 2 : i32
    %c0_i32_53 = arith.constant 0 : i32
    %c0_i32_54 = arith.constant 0 : i32
    %93 = tpu.memref_slice %arg2[%c0_i32_53, %c0_i32_54] : memref<118x128xf32, #tpu.memory_space<any>> -> memref<1x128xf32, #tpu.memory_space<any>>
    %c5_i32_55 = arith.constant 5 : i32
    %c0_i32_56 = arith.constant 0 : i32
    %94 = tpu.memref_slice %arg5[%arg0, %c5_i32_55, %c0_i32_56] : memref<2x18x128xf32, #tpu.memory_space<any>> -> memref<1x1x128xf32, #tpu.memory_space<any>>
    %95 = tpu.memref_squeeze %94 : memref<1x1x128xf32, #tpu.memory_space<any>> -> memref<1x128xf32, #tpu.memory_space<any>>
    %96 = tpu.memref_slice %arg6[%c2_i32_52] : memref<3x!tpu.dma_semaphore, #tpu.memory_space<semaphore_mem>> -> memref<1x!tpu.dma_semaphore, #tpu.memory_space<semaphore_mem>>
    %97 = tpu.memref_squeeze %96 : memref<1x!tpu.dma_semaphore, #tpu.memory_space<semaphore_mem>> -> memref<!tpu.dma_semaphore, #tpu.memory_space<semaphore_mem>>
    tpu.wait_dma2 semaphore(%97 : memref<!tpu.dma_semaphore, #tpu.memory_space<semaphore_mem>>) src(%93 : memref<1x128xf32, #tpu.memory_space<any>>) dst(%95 : memref<1x128xf32, #tpu.memory_space<any>>)
    %c2_i32_57 = arith.constant 2 : i32
    %c2_i32_58 = arith.constant 2 : i32
    %c0_i32_59 = arith.constant 0 : i32
    %c0_i32_60 = arith.constant 0 : i32
    %98 = tpu.memref_slice %arg2[%c0_i32_59, %c0_i32_60] : memref<118x128xf32, #tpu.memory_space<any>> -> memref<1x128xf32, #tpu.memory_space<any>>
    %c5_i32_61 = arith.constant 5 : i32
    %c0_i32_62 = arith.constant 0 : i32
    %99 = tpu.memref_slice %arg5[%arg0, %c5_i32_61, %c0_i32_62] : memref<2x18x128xf32, #tpu.memory_space<any>> -> memref<1x1x128xf32, #tpu.memory_space<any>>
    %100 = tpu.memref_squeeze %99 : memref<1x1x128xf32, #tpu.memory_space<any>> -> memref<1x128xf32, #tpu.memory_space<any>>
    %101 = tpu.memref_slice %arg6[%c2_i32_58] : memref<3x!tpu.dma_semaphore, #tpu.memory_space<semaphore_mem>> -> memref<1x!tpu.dma_semaphore, #tpu.memory_space<semaphore_mem>>
    %102 = tpu.memref_squeeze %101 : memref<1x!tpu.dma_semaphore, #tpu.memory_space<semaphore_mem>> -> memref<!tpu.dma_semaphore, #tpu.memory_space<semaphore_mem>>
    tpu.wait_dma2 semaphore(%102 : memref<!tpu.dma_semaphore, #tpu.memory_space<semaphore_mem>>) src(%98 : memref<1x128xf32, #tpu.memory_space<any>>) dst(%100 : memref<1x128xf32, #tpu.memory_space<any>>)
    %c3_i32_63 = arith.constant 3 : i32
    %c2_i32_64 = arith.constant 2 : i32
    %c0_i32_65 = arith.constant 0 : i32
    %c0_i32_66 = arith.constant 0 : i32
    %103 = tpu.memref_slice %arg2[%c0_i32_65, %c0_i32_66] : memref<118x128xf32, #tpu.memory_space<any>> -> memref<1x128xf32, #tpu.memory_space<any>>
    %c5_i32_67 = arith.constant 5 : i32
    %c0_i32_68 = arith.constant 0 : i32
    %104 = tpu.memref_slice %arg5[%arg0, %c5_i32_67, %c0_i32_68] : memref<2x18x128xf32, #tpu.memory_space<any>> -> memref<1x1x128xf32, #tpu.memory_space<any>>
    %105 = tpu.memref_squeeze %104 : memref<1x1x128xf32, #tpu.memory_space<any>> -> memref<1x128xf32, #tpu.memory_space<any>>
    %106 = tpu.memref_slice %arg6[%c2_i32_64] : memref<3x!tpu.dma_semaphore, #tpu.memory_space<semaphore_mem>> -> memref<1x!tpu.dma_semaphore, #tpu.memory_space<semaphore_mem>>
    %107 = tpu.memref_squeeze %106 : memref<1x!tpu.dma_semaphore, #tpu.memory_space<semaphore_mem>> -> memref<!tpu.dma_semaphore, #tpu.memory_space<semaphore_mem>>
    tpu.wait_dma2 semaphore(%107 : memref<!tpu.dma_semaphore, #tpu.memory_space<semaphore_mem>>) src(%103 : memref<1x128xf32, #tpu.memory_space<any>>) dst(%105 : memref<1x128xf32, #tpu.memory_space<any>>)
    %c4_i32_69 = arith.constant 4 : i32
    %c2_i32_70 = arith.constant 2 : i32
    %c0_i32_71 = arith.constant 0 : i32
    %c0_i32_72 = arith.constant 0 : i32
    %108 = tpu.memref_slice %arg2[%c0_i32_71, %c0_i32_72] : memref<118x128xf32, #tpu.memory_space<any>> -> memref<1x128xf32, #tpu.memory_space<any>>
    %c5_i32_73 = arith.constant 5 : i32
    %c0_i32_74 = arith.constant 0 : i32
    %109 = tpu.memref_slice %arg5[%arg0, %c5_i32_73, %c0_i32_74] : memref<2x18x128xf32, #tpu.memory_space<any>> -> memref<1x1x128xf32, #tpu.memory_space<any>>
    %110 = tpu.memref_squeeze %109 : memref<1x1x128xf32, #tpu.memory_space<any>> -> memref<1x128xf32, #tpu.memory_space<any>>
    %111 = tpu.memref_slice %arg6[%c2_i32_70] : memref<3x!tpu.dma_semaphore, #tpu.memory_space<semaphore_mem>> -> memref<1x!tpu.dma_semaphore, #tpu.memory_space<semaphore_mem>>
    %112 = tpu.memref_squeeze %111 : memref<1x!tpu.dma_semaphore, #tpu.memory_space<semaphore_mem>> -> memref<!tpu.dma_semaphore, #tpu.memory_space<semaphore_mem>>
    tpu.wait_dma2 semaphore(%112 : memref<!tpu.dma_semaphore, #tpu.memory_space<semaphore_mem>>) src(%108 : memref<1x128xf32, #tpu.memory_space<any>>) dst(%110 : memref<1x128xf32, #tpu.memory_space<any>>)
    %c5_i32_75 = arith.constant 5 : i32
    %c2_i32_76 = arith.constant 2 : i32
    %c0_i32_77 = arith.constant 0 : i32
    %c0_i32_78 = arith.constant 0 : i32
    %113 = tpu.memref_slice %arg2[%c0_i32_77, %c0_i32_78] : memref<118x128xf32, #tpu.memory_space<any>> -> memref<1x128xf32, #tpu.memory_space<any>>
    %c5_i32_79 = arith.constant 5 : i32
    %c0_i32_80 = arith.constant 0 : i32
    %114 = tpu.memref_slice %arg5[%arg0, %c5_i32_79, %c0_i32_80] : memref<2x18x128xf32, #tpu.memory_space<any>> -> memref<1x1x128xf32, #tpu.memory_space<any>>
    %115 = tpu.memref_squeeze %114 : memref<1x1x128xf32, #tpu.memory_space<any>> -> memref<1x128xf32, #tpu.memory_space<any>>
    %116 = tpu.memref_slice %arg6[%c2_i32_76] : memref<3x!tpu.dma_semaphore, #tpu.memory_space<semaphore_mem>> -> memref<1x!tpu.dma_semaphore, #tpu.memory_space<semaphore_mem>>
    %117 = tpu.memref_squeeze %116 : memref<1x!tpu.dma_semaphore, #tpu.memory_space<semaphore_mem>> -> memref<!tpu.dma_semaphore, #tpu.memory_space<semaphore_mem>>
    tpu.wait_dma2 semaphore(%117 : memref<!tpu.dma_semaphore, #tpu.memory_space<semaphore_mem>>) src(%113 : memref<1x128xf32, #tpu.memory_space<any>>) dst(%115 : memref<1x128xf32, #tpu.memory_space<any>>)
    %c6_i32_81 = arith.constant 6 : i32
    %c2_i32_82 = arith.constant 2 : i32
    %c0_i32_83 = arith.constant 0 : i32
    %c0_i32_84 = arith.constant 0 : i32
    %118 = tpu.memref_slice %arg2[%c0_i32_83, %c0_i32_84] : memref<118x128xf32, #tpu.memory_space<any>> -> memref<1x128xf32, #tpu.memory_space<any>>
    %c5_i32_85 = arith.constant 5 : i32
    %c0_i32_86 = arith.constant 0 : i32
    %119 = tpu.memref_slice %arg5[%arg0, %c5_i32_85, %c0_i32_86] : memref<2x18x128xf32, #tpu.memory_space<any>> -> memref<1x1x128xf32, #tpu.memory_space<any>>
    %120 = tpu.memref_squeeze %119 : memref<1x1x128xf32, #tpu.memory_space<any>> -> memref<1x128xf32, #tpu.memory_space<any>>
    %121 = tpu.memref_slice %arg6[%c2_i32_82] : memref<3x!tpu.dma_semaphore, #tpu.memory_space<semaphore_mem>> -> memref<1x!tpu.dma_semaphore, #tpu.memory_space<semaphore_mem>>
    %122 = tpu.memref_squeeze %121 : memref<1x!tpu.dma_semaphore, #tpu.memory_space<semaphore_mem>> -> memref<!tpu.dma_semaphore, #tpu.memory_space<semaphore_mem>>
    tpu.wait_dma2 semaphore(%122 : memref<!tpu.dma_semaphore, #tpu.memory_space<semaphore_mem>>) src(%118 : memref<1x128xf32, #tpu.memory_space<any>>) dst(%120 : memref<1x128xf32, #tpu.memory_space<any>>)
    %c7_i32_87 = arith.constant 7 : i32
    %c2_i32_88 = arith.constant 2 : i32
    %c0_i32_89 = arith.constant 0 : i32
    %c0_i32_90 = arith.constant 0 : i32
    %123 = tpu.memref_slice %arg2[%c0_i32_89, %c0_i32_90] : memref<118x128xf32, #tpu.memory_space<any>> -> memref<1x128xf32, #tpu.memory_space<any>>
    %c5_i32_91 = arith.constant 5 : i32
    %c0_i32_92 = arith.constant 0 : i32
    %124 = tpu.memref_slice %arg5[%arg0, %c5_i32_91, %c0_i32_92] : memref<2x18x128xf32, #tpu.memory_space<any>> -> memref<1x1x128xf32, #tpu.memory_space<any>>
    %125 = tpu.memref_squeeze %124 : memref<1x1x128xf32, #tpu.memory_space<any>> -> memref<1x128xf32, #tpu.memory_space<any>>
    %126 = tpu.memref_slice %arg6[%c2_i32_88] : memref<3x!tpu.dma_semaphore, #tpu.memory_space<semaphore_mem>> -> memref<1x!tpu.dma_semaphore, #tpu.memory_space<semaphore_mem>>
    %127 = tpu.memref_squeeze %126 : memref<1x!tpu.dma_semaphore, #tpu.memory_space<semaphore_mem>> -> memref<!tpu.dma_semaphore, #tpu.memory_space<semaphore_mem>>
    tpu.wait_dma2 semaphore(%127 : memref<!tpu.dma_semaphore, #tpu.memory_space<semaphore_mem>>) src(%123 : memref<1x128xf32, #tpu.memory_space<any>>) dst(%125 : memref<1x128xf32, #tpu.memory_space<any>>)
    %c0_i32_93 = arith.constant 0 : i32
    %c0_i32_94 = arith.constant 0 : i32
    %c0_i32_95 = arith.constant 0 : i32
    %128 = tpu.memref_slice %arg5[%arg0, %c0_i32_94, %c0_i32_95] : memref<2x18x128xf32, #tpu.memory_space<any>> -> memref<1x5x128xf32, #tpu.memory_space<any>>
    %129 = tpu.memref_squeeze %128 : memref<1x5x128xf32, #tpu.memory_space<any>> -> memref<5x128xf32, #tpu.memory_space<any>>
    %130 = tpu.memref_slice %arg6[%c0_i32_93] : memref<3x!tpu.dma_semaphore, #tpu.memory_space<semaphore_mem>> -> memref<1x!tpu.dma_semaphore, #tpu.memory_space<semaphore_mem>>
    %131 = tpu.memref_squeeze %130 : memref<1x!tpu.dma_semaphore, #tpu.memory_space<semaphore_mem>> -> memref<!tpu.dma_semaphore, #tpu.memory_space<semaphore_mem>>
    tpu.wait_dma2 semaphore(%131 : memref<!tpu.dma_semaphore, #tpu.memory_space<semaphore_mem>>) src(%arg3 : memref<5x128xf32, #tpu.memory_space<any>>) dst(%129 : memref<5x128xf32, #tpu.memory_space<any>>)
    %c1_i32_96 = arith.constant 1 : i32
    %c13_i32_97 = arith.constant 13 : i32
    %c0_i32_98 = arith.constant 0 : i32
    %132 = tpu.memref_slice %arg5[%arg0, %c13_i32_97, %c0_i32_98] : memref<2x18x128xf32, #tpu.memory_space<any>> -> memref<1x5x128xf32, #tpu.memory_space<any>>
    %133 = tpu.memref_squeeze %132 : memref<1x5x128xf32, #tpu.memory_space<any>> -> memref<5x128xf32, #tpu.memory_space<any>>
    %134 = tpu.memref_slice %arg6[%c1_i32_96] : memref<3x!tpu.dma_semaphore, #tpu.memory_space<semaphore_mem>> -> memref<1x!tpu.dma_semaphore, #tpu.memory_space<semaphore_mem>>
    %135 = tpu.memref_squeeze %134 : memref<1x!tpu.dma_semaphore, #tpu.memory_space<semaphore_mem>> -> memref<!tpu.dma_semaphore, #tpu.memory_space<semaphore_mem>>
    tpu.wait_dma2 semaphore(%135 : memref<!tpu.dma_semaphore, #tpu.memory_space<semaphore_mem>>) src(%arg4 : memref<5x128xf32, #tpu.memory_space<any>>) dst(%133 : memref<5x128xf32, #tpu.memory_space<any>>)
    return
  }
}

</mosaic_0001>

<llo_original>
// kernel: tpu_custom_call.1
$region0: #{tpu_custom_call.1}
  #allocation0 [shape = 'u32[]', space=smem, size = 0x4, offset = 0x4, fixed_abs, tag = 'smem constant byte address 0x4 - core index']
  #allocation1 [shape = 'u32[144,128]{1,0:T(1,128)}', space=vmem, size = 0x12000, scoped, tag = 'internal scratch']
  #allocation2 [shape = 's32[3]{0}', space=sflag, size = 0xc, scoped, tag = 'scratch operand']
  #allocation3 [shape = 's32[1]{0}', space=sflag, size = 0x4, scoped, tag = 'scoped memory for tpu_custom_call.1']
  #allocation4 [shape = 'u8[512]{0}', space=smem, size = 0x200, scoped, tag = 'prefetched SMEM operand 0']
  #allocation5 [shape = 's32[]', space=sflag, size = 0x4, offset = 0, fixed_abs, tag = 'sflag constant byte address 0x0 - dummy sync flag']
  #allocation6 [shape = 's32[]', space=sflag, size = 0x4, offset = 0, fixed_abs, tag = 'sflag constant byte address 0x0 - dummy sync flag']
  #allocation7 [shape = 'u32[]', space=smem, size = 0x4, offset = 0x44, fixed_abs, tag = 'smem constant byte address 0x44 - assertion arg 0']
  #allocation8 [shape = 'u32[]', space=smem, size = 0x4, offset = 0x48, fixed_abs, tag = 'smem constant byte address 0x48 - assertion arg 1']
  #allocation9 [shape = 's32[]', space=sflag, size = 0x4, offset = 0, fixed_abs, tag = 'sflag constant byte address 0x0 - dummy sync flag']
  #allocation10 [shape = 's32[]', space=sflag, size = 0x4, offset = 0, fixed_abs, tag = 'sflag constant byte address 0x0 - dummy sync flag']
  #allocation11 [shape = 's32[]', space=sflag, size = 0x4, offset = 0, fixed_abs, tag = 'sflag constant byte address 0x0 - dummy sync flag']
  #allocation12 [shape = 's32[]', space=sflag, size = 0x4, offset = 0, fixed_abs, tag = 'sflag constant byte address 0x0 - dummy sync flag']
  #allocation13 [shape = 's32[]', space=sflag, size = 0x4, offset = 0, fixed_abs, tag = 'sflag constant byte address 0x0 - dummy sync flag']
  #allocation14 [shape = 's32[]', space=sflag, size = 0x4, offset = 0, fixed_abs, tag = 'sflag constant byte address 0x0 - dummy sync flag']
  #allocation15 [shape = 's32[]', space=sflag, size = 0x4, offset = 0, fixed_abs, tag = 'sflag constant byte address 0x0 - dummy sync flag']
  #allocation16 [shape = 's32[]', space=sflag, size = 0x4, offset = 0, fixed_abs, tag = 'sflag constant byte address 0x0 - dummy sync flag']
  #allocation17 [shape = 's32[]', space=sflag, size = 0x4, offset = 0, fixed_abs, tag = 'sflag constant byte address 0x0 - dummy sync flag']
  #allocation18 [shape = 's32[]', space=sflag, size = 0x4, offset = 0, fixed_abs, tag = 'sflag constant byte address 0x0 - dummy sync flag']
  #allocation19 [shape = 's32[]', space=sflag, size = 0x4, offset = 0, fixed_abs, tag = 'sflag constant byte address 0x0 - dummy sync flag']
  #allocation20 [shape = 's32[]', space=sflag, size = 0x4, offset = 0, fixed_abs, tag = 'sflag constant byte address 0x0 - dummy sync flag']
  #allocation21 [shape = 's32[]', space=sflag, size = 0x4, offset = 0, fixed_abs, tag = 'sflag constant byte address 0x0 - dummy sync flag']
  #allocation22 [shape = 's32[]', space=sflag, size = 0x4, offset = 0, fixed_abs, tag = 'sflag constant byte address 0x0 - dummy sync flag']
  #allocation23 [shape = 's32[]', space=sflag, size = 0x4, offset = 0, fixed_abs, tag = 'sflag constant byte address 0x0 - dummy sync flag']
  #allocation24 [shape = 's32[]', space=sflag, size = 0x4, offset = 0, fixed_abs, tag = 'sflag constant byte address 0x0 - dummy sync flag']
  #allocation25 [shape = 's32[]', space=sflag, size = 0x4, offset = 0, fixed_abs, tag = 'sflag constant byte address 0x0 - dummy sync flag']
  #allocation26 [shape = 's32[]', space=sflag, size = 0x4, offset = 0, fixed_abs, tag = 'sflag constant byte address 0x0 - dummy sync flag']
  %s0 = inlined_call_operand.hbm [shape: s32[16], index: 0, kind: input, shape index: {}]
  %s1 = inlined_call_operand.hbm [shape: f32[118,128], index: 1, kind: input, shape index: {}]
  %s2 = inlined_call_operand.hbm [shape: f32[5,128], index: 2, kind: input, shape index: {}]
  %s3 = inlined_call_operand.hbm [shape: f32[5,128], index: 3, kind: input, shape index: {}]
  %s4 = inlined_call_operand.vmem [shape: f32[2,18,128], index: 4, kind: output, shape index: {}]
  %s5 = sld [smem:[#allocation0]]
  $region49: #{tpu_custom_call.1} parent=0
    _
  %s7 = ssub.s32 1, %s5
  %s8 = scalar_select 0, %s7, %s5
  %10 = dma.hbm_to_smem %s0, 16, [#allocation4], [#allocation3]
  %11 = dma.done [#allocation3], 16
  %12 = sfence
  loop: start=0, step=1, limit=2
  $region2: #{tpu_custom_call.1} parent=0 // loop_pre_header
    _
  $region3: #{tpu_custom_call.1} parent=0 // loop_header
    %s14 = sphi 0, %s18
    %p15 = scmp.ge.s32.totalorder %s14, 2
  $region4: #{tpu_custom_call.1} parent=0 // loop_header_branch
    %17 = sbr.rel (%p15) target = $region8
  $region5: #{tpu_custom_call.1} parent=0 // loop_body
    %s19 = sadd.s32 %s14, 1
    %s20 = smul.u32 %s14, 24
    %s21 = scalar_lea.vmem %s4, %s20
    // Predicated region
    $region9: #{tpu_custom_call.1} parent=5 // pred_check
      _
    $region10: #{tpu_custom_call.1} parent=5 // pred_check_branch
      %23 = sbr.rel target = $region12
    $region11: #{tpu_custom_call.1} parent=5 // pred_region
      %24 = sst [smem:[#allocation7]] [#allocation6]
      %25 = sst [smem:[#allocation8]] [#allocation5]
    $region12: #{tpu_custom_call.1} parent=5 // pred_fallthru
      _
    %27 = shalt.err (0)
    %s29 = sshll.u32 %s21, 4
    %s30 = int_to_ptr.vmem [resolvable:$true] %s29
    %32 = dma.hbm_to_vmem [thread:$0]  %s2, 80, %s30, [#allocation2]
    %s33 = sadd.s32 13, %s20
    %s34 = scalar_lea.vmem %s4, %s33
    %s35 = scalar_lea.sflag [#allocation2], 1
    // Predicated region
    $region13: #{tpu_custom_call.1} parent=5 // pred_check
      _
    $region14: #{tpu_custom_call.1} parent=5 // pred_check_branch
      %37 = sbr.rel target = $region16
    $region15: #{tpu_custom_call.1} parent=5 // pred_region
      %38 = sst [smem:[#allocation7]] [#allocation10]
      %39 = sst [smem:[#allocation8]] [#allocation9]
    $region16: #{tpu_custom_call.1} parent=5 // pred_fallthru
      _
    %41 = shalt.err (0)
    %s43 = sshll.u32 %s34, 4
    %s44 = int_to_ptr.vmem [resolvable:$true] %s43
    %46 = dma.hbm_to_vmem [thread:$0]  %s3, 80, %s44, %s35
    %s47 = smul.u32 %s14, 8
    %s48 = sld [smem:[#allocation4 + %s47]]
    %s49 = smul.addr %s48, 16
    %s50 = scalar_lea.hbm %s1, %s49
    %s51 = sadd.s32 5, %s20
    %s52 = scalar_lea.vmem %s4, %s51
    %s53 = scalar_lea.sflag [#allocation2], 2
    // Predicated region
    $region17: #{tpu_custom_call.1} parent=5 // pred_check
      _
    $region18: #{tpu_custom_call.1} parent=5 // pred_check_branch
      %55 = sbr.rel target = $region20
    $region19: #{tpu_custom_call.1} parent=5 // pred_region
      %56 = sst [smem:[#allocation7]] [#allocation12]
      %57 = sst [smem:[#allocation8]] [#allocation11]
    $region20: #{tpu_custom_call.1} parent=5 // pred_fallthru
      _
    %59 = shalt.err (0)
    %s61 = sshll.u32 %s52, 4
    %s62 = int_to_ptr.vmem [resolvable:$true] %s61
    %64 = dma.hbm_to_vmem [thread:$0]  %s50, 16, %s62, %s53
    %s65 = sadd.s32 %s47, 1
    %s66 = sld [smem:[#allocation4 + %s65]]
    %s67 = smul.addr %s66, 16
    %s68 = scalar_lea.hbm %s1, %s67
    %s69 = sadd.s32 6, %s20
    %s70 = scalar_lea.vmem %s4, %s69
    // Predicated region
    $region21: #{tpu_custom_call.1} parent=5 // pred_check
      _
    $region22: #{tpu_custom_call.1} parent=5 // pred_check_branch
      %72 = sbr.rel target = $region24
    $region23: #{tpu_custom_call.1} parent=5 // pred_region
      %73 = sst [smem:[#allocation7]] [#allocation14]
      %74 = sst [smem:[#allocation8]] [#allocation13]
    $region24: #{tpu_custom_call.1} parent=5 // pred_fallthru
      _
    %76 = shalt.err (0)
    %s78 = sshll.u32 %s70, 4
    %s79 = int_to_ptr.vmem [resolvable:$true] %s78
    %81 = dma.hbm_to_vmem [thread:$0]  %s68, 16, %s79, %s53
    %s82 = sadd.s32 %s47, 2
    %s83 = sld [smem:[#allocation4 + %s82]]
    %s84 = smul.addr %s83, 16
    %s85 = scalar_lea.hbm %s1, %s84
    %s86 = sadd.s32 7, %s20
    %s87 = scalar_lea.vmem %s4, %s86
    // Predicated region
    $region25: #{tpu_custom_call.1} parent=5 // pred_check
      _
    $region26: #{tpu_custom_call.1} parent=5 // pred_check_branch
      %89 = sbr.rel target = $region28
    $region27: #{tpu_custom_call.1} parent=5 // pred_region
      %90 = sst [smem:[#allocation7]] [#allocation16]
      %91 = sst [smem:[#allocation8]] [#allocation15]
    $region28: #{tpu_custom_call.1} parent=5 // pred_fallthru
      _
    %93 = shalt.err (0)
    %s95 = sshll.u32 %s87, 4
    %s96 = int_to_ptr.vmem [resolvable:$true] %s95
    %98 = dma.hbm_to_vmem [thread:$0]  %s85, 16, %s96, %s53
    %s99 = sadd.s32 %s47, 3
    %s100 = sld [smem:[#allocation4 + %s99]]
    %s101 = smul.addr %s100, 16
    %s102 = scalar_lea.hbm %s1, %s101
    %s103 = sadd.s32 8, %s20
    %s104 = scalar_lea.vmem %s4, %s103
    // Predicated region
    $region29: #{tpu_custom_call.1} parent=5 // pred_check
      _
    $region30: #{tpu_custom_call.1} parent=5 // pred_check_branch
      %106 = sbr.rel target = $region32
    $region31: #{tpu_custom_call.1} parent=5 // pred_region
      %107 = sst [smem:[#allocation7]] [#allocation18]
      %108 = sst [smem:[#allocation8]] [#allocation17]
    $region32: #{tpu_custom_call.1} parent=5 // pred_fallthru
      _
    %110 = shalt.err (0)
    %s112 = sshll.u32 %s104, 4
    %s113 = int_to_ptr.vmem [resolvable:$true] %s112
    %115 = dma.hbm_to_vmem [thread:$0]  %s102, 16, %s113, %s53
    %s116 = sadd.s32 %s47, 4
    %s117 = sld [smem:[#allocation4 + %s116]]
    %s118 = smul.addr %s117, 16
    %s119 = scalar_lea.hbm %s1, %s118
    %s120 = sadd.s32 9, %s20
    %s121 = scalar_lea.vmem %s4, %s120
    // Predicated region
    $region33: #{tpu_custom_call.1} parent=5 // pred_check
      _
    $region34: #{tpu_custom_call.1} parent=5 // pred_check_branch
      %123 = sbr.rel target = $region36
    $region35: #{tpu_custom_call.1} parent=5 // pred_region
      %124 = sst [smem:[#allocation7]] [#allocation20]
      %125 = sst [smem:[#allocation8]] [#allocation19]
    $region36: #{tpu_custom_call.1} parent=5 // pred_fallthru
      _
    %127 = shalt.err (0)
    %s129 = sshll.u32 %s121, 4
    %s130 = int_to_ptr.vmem [resolvable:$true] %s129
    %132 = dma.hbm_to_vmem [thread:$0]  %s119, 16, %s130, %s53
    %s133 = sadd.s32 %s47, 5
    %s134 = sld [smem:[#allocation4 + %s133]]
    %s135 = smul.addr %s134, 16
    %s136 = scalar_lea.hbm %s1, %s135
    %s137 = sadd.s32 10, %s20
    %s138 = scalar_lea.vmem %s4, %s137
    // Predicated region
    $region37: #{tpu_custom_call.1} parent=5 // pred_check
      _
    $region38: #{tpu_custom_call.1} parent=5 // pred_check_branch
      %140 = sbr.rel target = $region40
    $region39: #{tpu_custom_call.1} parent=5 // pred_region
      %141 = sst [smem:[#allocation7]] [#allocation22]
      %142 = sst [smem:[#allocation8]] [#allocation21]
    $region40: #{tpu_custom_call.1} parent=5 // pred_fallthru
      _
    %144 = shalt.err (0)
    %s146 = sshll.u32 %s138, 4
    %s147 = int_to_ptr.vmem [resolvable:$true] %s146
    %149 = dma.hbm_to_vmem [thread:$0]  %s136, 16, %s147, %s53
    %s150 = sadd.s32 %s47, 6
    %s151 = sld [smem:[#allocation4 + %s150]]
    %s152 = smul.addr %s151, 16
    %s153 = scalar_lea.hbm %s1, %s152
    %s154 = sadd.s32 11, %s20
    %s155 = scalar_lea.vmem %s4, %s154
    // Predicated region
    $region41: #{tpu_custom_call.1} parent=5 // pred_check
      _
    $region42: #{tpu_custom_call.1} parent=5 // pred_check_branch
      %157 = sbr.rel target = $region44
    $region43: #{tpu_custom_call.1} parent=5 // pred_region
      %158 = sst [smem:[#allocation7]] [#allocation24]
      %159 = sst [smem:[#allocation8]] [#allocation23]
    $region44: #{tpu_custom_call.1} parent=5 // pred_fallthru
      _
    %161 = shalt.err (0)
    %s163 = sshll.u32 %s155, 4
    %s164 = int_to_ptr.vmem [resolvable:$true] %s163
    %166 = dma.hbm_to_vmem [thread:$0]  %s153, 16, %s164, %s53
    %s167 = sadd.s32 %s47, 7
    %s168 = sld [smem:[#allocation4 + %s167]]
    %s169 = smul.addr %s168, 16
    %s170 = scalar_lea.hbm %s1, %s169
    %s171 = sadd.s32 12, %s20
    %s172 = scalar_lea.vmem %s4, %s171
    // Predicated region
    $region45: #{tpu_custom_call.1} parent=5 // pred_check
      _
    $region46: #{tpu_custom_call.1} parent=5 // pred_check_branch
      %174 = sbr.rel target = $region48
    $region47: #{tpu_custom_call.1} parent=5 // pred_region
      %175 = sst [smem:[#allocation7]] [#allocation26]
      %176 = sst [smem:[#allocation8]] [#allocation25]
    $region48: #{tpu_custom_call.1} parent=5 // pred_fallthru
      _
    %178 = shalt.err (0)
    %s180 = sshll.u32 %s172, 4
    %s181 = int_to_ptr.vmem [resolvable:$true] %s180
    %183 = dma.hbm_to_vmem [thread:$0]  %s170, 16, %s181, %s53
    %s184 = smul.u32 1, 1
    %s185 = sshll.u32 %s184, 4
    %186 = dma.done %s53, %s185
    %s187 = sshll.u32 %s184, 4
    %188 = dma.done %s53, %s187
    %s189 = sshll.u32 %s184, 4
    %190 = dma.done %s53, %s189
    %s191 = sshll.u32 %s184, 4
    %192 = dma.done %s53, %s191
    %s193 = sshll.u32 %s184, 4
    %194 = dma.done %s53, %s193
    %s195 = sshll.u32 %s184, 4
    %196 = dma.done %s53, %s195
    %s197 = sshll.u32 %s184, 4
    %198 = dma.done %s53, %s197
    %s199 = sshll.u32 %s184, 4
    %200 = dma.done %s53, %s199
    %s201 = smul.u32 5, 1
    %s202 = sshll.u32 %s201, 4
    %203 = dma.done [#allocation2], %s202
    %s204 = sshll.u32 %s201, 4
    %205 = dma.done %s35, %s204
  $region6: #{tpu_custom_call.1} parent=0 // loop_footer
    %s18 = sadd.s32 1, %s14
  $region7: #{tpu_custom_call.1} parent=0 // loop_footer_branch
    %13 = sbr.rel target = $region3
  $region8: #{tpu_custom_call.1} parent=0 // loop_exit
    _
  %206 = vsyncmov [#allocation2]
  %s207 = vpop.sfrf %206
  %p208 = scmp.eq.s32.totalorder %s207, 0
  %p209 = pneg %p208
  %211 = shalt.err (%p209)
  %s212 = scalar_lea.sflag [#allocation2], 1
  %213 = vsyncmov %s212
  %s214 = vpop.sfrf %213
  %p215 = scmp.eq.s32.totalorder %s214, 0
  %p216 = pneg %p215
  %218 = shalt.err (%p216)
  %s219 = scalar_lea.sflag [#allocation2], 2
  %220 = vsyncmov %s219
  %s221 = vpop.sfrf %220
  %p222 = scmp.eq.s32.totalorder %s221, 0
  %p223 = pneg %p222
  %225 = shalt.err (%p223)

</llo_original>
